<compile_context>
chip_gen: v7x
topology: tpu7x:2x2x1
jax: 0.10.0
libtpu: 0.0.40
codegen_flags: <defaults>
</compile_context>

<pallas_src>
import jax
import jax.numpy as jnp
from jax.experimental import pallas as pl
from jax.experimental.pallas import tpu as pltpu


def _add_kernel(x_ref, b_ref, o_ref):
    # Elementwise VPU add.  b_ref is either (1, TL) (broadcast over sublanes,
    # 2-D path) or (TM, 1) (broadcast over lanes, 4-D path).
    o_ref[...] = x_ref[...] + b_ref[...]


def _choose_tiles(M, L, itemsize):
    """Pick (TM, TL) so one block stays <= ~2 MiB (=> ~8 MiB total with
    double-buffered input + output), safe for scoped VMEM on v5e/v6e/v7x."""
    # Lane tile: multiple of 128 when tiling, otherwise the full (small) dim.
    TL = L if L <= 2048 else 2048
    max_tm = max(8, (2 * 1024 * 1024) // (TL * itemsize))
    max_tm = max(8, (max_tm // 8) * 8)   # sublane-aligned when actually tiling
    TM = M if M <= max_tm else max_tm
    return TM, TL


def _tiled_bias_add(x2d, bias2d, bias_index_map):
    """x2d: (M, L); bias2d: (1, L) or (M, 1).  Row/lane-tiled Pallas add."""
    M, L = x2d.shape
    TM, TL = _choose_tiles(M, L, x2d.dtype.itemsize)
    grid = (pl.cdiv(M, TM), pl.cdiv(L, TL))
    bm, bl = bias2d.shape
    b_block = (1 if bm == 1 else TM, 1 if bl == 1 else TL)
    return pl.pallas_call(
        _add_kernel,
        out_shape=jax.ShapeDtypeStruct((M, L), x2d.dtype),
        grid=grid,
        in_specs=[
            pl.BlockSpec((TM, TL), lambda i, j: (i, j)),
            pl.BlockSpec(b_block, bias_index_map),
        ],
        out_specs=pl.BlockSpec((TM, TL), lambda i, j: (i, j)),
        compiler_params=pltpu.CompilerParams(
            dimension_semantics=("parallel", "parallel")),
    )(x2d, bias2d)


def _fold_factor(M, C):
    """Largest k dividing M (k*C <= 2048) that makes the lane width k*C dense,
    preferring k*C a multiple of 128 (unmasked vector stores)."""
    if C >= 128:
        return 1
    best_k, best_dense = 1, (C % 128 == 0)
    cap = min(M, max(1, 2048 // C))
    for k in range(1, cap + 1):
        if M % k:
            continue
        dense = (k * C) % 128 == 0
        if (dense, k) > (best_dense, best_k):
            best_k, best_dense = k, dense
    return best_k


def _add_bias_2d(x2d, bias):
    """PyTorch 2-D branch: x (N, C) + bias.view(1, C)."""
    M, C = x2d.shape
    k = _fold_factor(M, C)
    if k > 1:
        # Fold k consecutive rows into one lane-dense row; tile the bias k x.
        xr = x2d.reshape(M // k, k * C)
        br = jnp.tile(bias, k).reshape(1, k * C).astype(x2d.dtype)
        out = _tiled_bias_add(xr, br, lambda i, j: (0, j))
        return out.reshape(M, C)
    b_row = bias.reshape(1, C).astype(x2d.dtype)
    return _tiled_bias_add(x2d, b_row, lambda i, j: (0, j))


def _add_bias_4d(x, bias):
    """PyTorch 4-D branch: x (N, C, H, W) + bias.view(1, C, 1, 1).

    NCHW is kept (no transposes).  Flattening to (N*C, H*W) is a free reshape;
    the spatial dim lands on the lane axis (dense), and the per-(n, c) bias is
    a (N*C, 1) column broadcast across lanes inside the kernel."""
    N, C, H, W = x.shape
    x_rows = x.reshape(N * C, H * W)
    b_col = jnp.tile(bias, N).reshape(N * C, 1).astype(x.dtype)
    out = _tiled_bias_add(x_rows, b_col, lambda i, j: (i, 0))
    return out.reshape(N, C, H, W)


def add_bias_forward(x, bias_param):
    """Equivalent of AddBias.forward.

    bias_param has shape (C, 1) (same as the nn.Parameter after unsqueeze(1)).
    x is either (N, C) or (N, C, H, W) (NCHW), matching PyTorch.
    """
    bias = bias_param.reshape(-1)  # (C,)
    if x.ndim == 2:
        return _add_bias_2d(x, bias)
    if x.ndim == 4:
        return _add_bias_4d(x, bias)
    raise ValueError("AddBias expects a 2-D or 4-D input")


if __name__ == "__main__":
    key = jax.random.PRNGKey(0)
    k_bias, k_x4, k_x2, k_b2, k_xb, k_x2b = jax.random.split(key, 6)

    C = 4
    # Deterministic synthetic parameter, shape (C, 1) like nn.Parameter(bias.unsqueeze(1)).
    bias_param = jax.random.normal(k_bias, (C, 1), dtype=jnp.float32)

    # 4-D (NCHW) case, matching a conv feature map.
    x4 = jax.random.normal(k_x4, (2, C, 16, 16), dtype=jnp.float32)
    out4 = jax.block_until_ready(add_bias_forward(x4, bias_param))
    ref4 = x4 + bias_param.reshape(1, C, 1, 1)
    assert out4.shape == x4.shape and out4.dtype == x4.dtype
    assert jnp.allclose(out4, ref4, atol=1e-6)

    # 2-D case (e.g. logits / diag-gaussian mean path), tiny batch.
    x2 = jax.random.normal(k_x2, (2, C), dtype=jnp.float32)
    out2 = jax.block_until_ready(add_bias_forward(x2, bias_param))
    ref2 = x2 + bias_param.reshape(1, C)
    assert out2.shape == x2.shape and out2.dtype == x2.dtype
    assert jnp.allclose(out2, ref2, atol=1e-6)

    # 2-D case with a batch that folds into a fully lane-dense layout.
    x2b = jax.random.normal(k_x2b, (64, C), dtype=jnp.float32)
    out2b = jax.block_until_ready(add_bias_forward(x2b, bias_param))
    assert jnp.allclose(out2b, x2b + bias_param.reshape(1, C), atol=1e-6)

    # Medium 4-D case that exercises the multi-block row tiling (grid > 1).
    C2 = 64
    bias_param2 = jax.random.normal(k_b2, (C2, 1), dtype=jnp.float32)
    x4b = jax.random.normal(k_xb, (16, C2, 32, 32), dtype=jnp.float32)
    out4b = jax.block_until_ready(add_bias_forward(x4b, bias_param2))
    ref4b = x4b + bias_param2.reshape(1, C2, 1, 1)
    assert jnp.allclose(out4b, ref4b, atol=1e-6)

    print("KERNEL_OK")
</pallas_src>

<mosaic_0001>
module attributes {stable_mosaic.version = 11 : i64} {
  func.func @_add_kernel(%arg0: i32, %arg1: i32, %arg2: memref<8x256xf32, #tpu.memory_space<vmem>>, %arg3: memref<8x1xf32, #tpu.memory_space<vmem>>, %arg4: memref<8x256xf32, #tpu.memory_space<vmem>>) attributes {dimension_semantics = [#tpu.dimension_semantics<parallel>, #tpu.dimension_semantics<parallel>], iteration_bounds = array<i64: 1, 1>, scalar_prefetch = 0 : i64, scratch_operands = 0 : i64, tpu.core_type = #tpu.core_type<tc>, window_params = [{transform_indices = @transform_0, window_bounds = array<i64: 8, 256>}, {transform_indices = @transform_1, window_bounds = array<i64: 8, 1>}, {transform_indices = @transform_2, window_bounds = array<i64: 8, 256>}]} {
    %c0 = arith.constant 0 : index
    %c0_0 = arith.constant 0 : index
    %0 = vector.load %arg2[%c0, %c0_0] : memref<8x256xf32, #tpu.memory_space<vmem>>, vector<8x256xf32>
    %c0_1 = arith.constant 0 : index
    %c0_2 = arith.constant 0 : index
    %1 = vector.load %arg3[%c0_1, %c0_2] : memref<8x1xf32, #tpu.memory_space<vmem>>, vector<8x1xf32>
    %2 = vector.broadcast %1 : vector<8x1xf32> to vector<8x256xf32>
    %3 = arith.addf %0, %2 : vector<8x256xf32>
    %c0_3 = arith.constant 0 : index
    %c0_4 = arith.constant 0 : index
    %4 = vector.load %arg4[%c0_3, %c0_4] : memref<8x256xf32, #tpu.memory_space<vmem>>, vector<8x256xf32>
    tpu.vector_store %arg4[%c0_3, %c0_4], %3 {strides = array<i32>} : memref<8x256xf32, #tpu.memory_space<vmem>>, vector<8x256xf32>,
    return
  }
  func.func @transform_0(%arg0: i32, %arg1: i32) -> (i32, i32) {
    %c0_i32 = arith.constant 0 : i32
    return %arg0, %arg1 : i32, i32
  }
  func.func @transform_1(%arg0: i32, %arg1: i32) -> (i32, i32) {
    %c0_i32 = arith.constant 0 : i32
    %c0_i32_0 = arith.constant 0 : i32
    return %arg0, %c0_i32 : i32, i32
  }
  func.func @transform_2(%arg0: i32, %arg1: i32) -> (i32, i32) {
    %c0_i32 = arith.constant 0 : i32
    return %arg0, %arg1 : i32, i32
  }
}

</mosaic_0001>

<llo_original>
// kernel: tpu_custom_call.1
$region0: #{tpu_custom_call.1}
  #allocation0 [shape = 'u32[]', space=smem, size = 0x4, offset = 0x4, fixed_abs, tag = 'smem constant byte address 0x4 - core index']
  #allocation1 [shape = 'u32[144,128]{1,0:T(1,128)}', space=vmem, size = 0x12000, scoped, tag = 'internal scratch']
  %s0 = inlined_call_operand.hbm [shape: f32[8,256], index: 0, kind: input, shape index: {}]
  %s1 = inlined_call_operand.vmem [shape: f32[8,1], index: 1, kind: input, shape index: {}]
  %s2 = inlined_call_operand.hbm [shape: f32[8,256], index: 2, kind: output, shape index: {}]
  %s3 = sld [smem:[#allocation0]]
  $region22: #{tpu_custom_call.1} parent=0
    _
  %s5 = ssub.s32 1, %s3
  %s6 = scalar_select 0, %s5, %s3
  $region1: #{tpu_custom_call.1} parent=0
    #allocation2 [shape = 'u8[8192]{0}', space=vmem, size = 0x2000, scoped, tag = 'input window, operand 0, single buffered']
    #allocation3 [shape = 's32[1]{0}', space=sflag, size = 0x4, scoped, tag = 'scoped memory for tpu_custom_call.1']
    #allocation4 [shape = 's32[1]{0}', space=sflag, size = 0x4, scoped, tag = 'scoped memory for tpu_custom_call.1']
    #allocation5 [shape = 'u8[8192]{0}', space=vmem, size = 0x2000, scoped, tag = 'output window, operand 0, single buffered']
    %7 = vsyncpa [#allocation3], 0
    %8 = vsyncpa [#allocation4], 0
    // Predicated region
    $region2: #{tpu_custom_call.1} parent=1 // pred_check
      _
    $region3: #{tpu_custom_call.1} parent=1 // pred_check_branch
      %10 = sbr.rel (0) target = $region5
    $region4: #{tpu_custom_call.1} parent=1 // pred_region
      %s12 = ssub.s32 256, 256
      %13 = vsyncadd [#allocation3], %s12
      %s15 = sshll.u32 [#allocation2], 4
      %s16 = int_to_ptr.vmem [resolvable:$true] %s15
      %18 = dma.hbm_to_vmem [thread:$0]  %s0, 256, %s16, [#allocation3]
    $region5: #{tpu_custom_call.1} parent=1 // pred_fallthru
      _
    // Predicated region
    $region6: #{tpu_custom_call.1} parent=1 // pred_check
      _
    $region7: #{tpu_custom_call.1} parent=1 // pred_check_branch
      %20 = sbr.rel (0) target = $region9
    $region8: #{tpu_custom_call.1} parent=1 // pred_region
      _
    $region9: #{tpu_custom_call.1} parent=1 // pred_fallthru
      _
    // Predicated region
    $region10: #{tpu_custom_call.1} parent=1 // pred_check
      _
    $region11: #{tpu_custom_call.1} parent=1 // pred_check_branch
      %22 = sbr.rel (0) target = $region13
    $region12: #{tpu_custom_call.1} parent=1 // pred_region
      %23 = dma.done [#allocation3], 256
    $region13: #{tpu_custom_call.1} parent=1 // pred_fallthru
      _
    %v24 = vld [vmem:[#allocation2] sm:$0xff]
    %v25 = vld [vmem:[#allocation2 + $0x8] sm:$0xff]
    %v26 = vld [vmem:[%s1] sm:$0xff]
    %28 = vset.pattern.permute.xlu0 0
    %29 = vperm.xlu0 %28, %v26
    %v30 = vpop.permute.xlu0 %29
    %v32 = vadd.f32 %v24, %v30
    %v33 = vadd.f32 %v25, %v30
    %34 = vst [vmem:[#allocation5] sm:$0xff] %v32
    %35 = vst [vmem:[#allocation5 + $0x8] sm:$0xff] %v33
    // Predicated region
    $region14: #{tpu_custom_call.1} parent=1 // pred_check
      _
    $region15: #{tpu_custom_call.1} parent=1 // pred_check_branch
      %37 = sbr.rel (0) target = $region17
    $region16: #{tpu_custom_call.1} parent=1 // pred_region
      %s39 = ssub.s32 256, 256
      %40 = vsyncadd [#allocation4], %s39
      %s42 = sshll.u32 [#allocation5], 4
      %s43 = int_to_ptr.vmem [resolvable:$true] %s42
      %45 = dma.vmem_to_hbm [thread:$0]  %s43, 256, %s2, [#allocation4]
    $region17: #{tpu_custom_call.1} parent=1 // pred_fallthru
      _
    // Predicated region
    $region18: #{tpu_custom_call.1} parent=1 // pred_check
      _
    $region19: #{tpu_custom_call.1} parent=1 // pred_check_branch
      %47 = sbr.rel (0) target = $region21
    $region20: #{tpu_custom_call.1} parent=1 // pred_region
      %48 = dma.done [#allocation4], 256
    $region21: #{tpu_custom_call.1} parent=1 // pred_fallthru
      _
    %49 = vsyncpa [#allocation3], 1
    %50 = vsyncpa [#allocation4], 1

</llo_original>
